<compile_context>
chip_gen: v7x
topology: tpu7x:2x2x1
jax: 0.10.0
libtpu: 0.0.40
codegen_flags: <defaults>
</compile_context>

<pallas_src>
import jax
import jax.numpy as jnp
from jax.experimental import pallas as pl
from jax.experimental.pallas import tpu as pltpu


def _identity_kernel(x_ref, o_ref):
    # Pure copy of the current tile (input and output HBM buffers are aliased).
    o_ref[...] = x_ref[...]


# ~2 MiB per block: 2 inputs-bufs + 2 output-bufs (double buffering) = ~8 MiB
# live VMEM, safe under v5e's 16 MiB default scoped VMEM and v7x's 32 MiB,
# and already well past the ~85%-of-roofline block-size knee measured on v6e.
_TARGET_BLOCK_BYTES = 2 * 1024 * 1024

# Below this, pallas_call fixed cost dwarfs the copy — return x directly.
_SMALL_INPUT_BYTES = 256 * 1024


def _lane_dense_2d(total: int):
    """Fold `total` elements into (rows, L) with L a large multiple of 128."""
    for lanes in (4096, 2048, 1024, 512, 256, 128):
        if total % lanes == 0:
            return total // lanes, lanes
    return None


def _pick_tile_rows(rows: int, lanes: int, itemsize: int) -> int:
    """Largest row-tile that keeps blocks near the target byte budget."""
    if rows <= 8:
        return rows
    tile_r = _TARGET_BLOCK_BYTES // (lanes * itemsize)
    tile_r = max(8, (tile_r // 8) * 8)
    if tile_r >= rows:
        # Whole array fits in one block: still split in two (when legal) so a
        # "parallel" grid axis can be sharded across v7x's 2 TensorCores.
        if rows >= 16:
            half = max(8, ((rows // 2) // 8) * 8)
            return min(rows, half)
        return rows
    return tile_r


def identity_pallas(x: jnp.ndarray) -> jnp.ndarray:
    """Identity forward implemented as an explicit Pallas TPU copy kernel."""
    orig_shape = x.shape
    dtype = x.dtype
    itemsize = jnp.dtype(dtype).itemsize
    total = int(x.size)

    if total == 0:
        return x

    layout = _lane_dense_2d(total)
    if layout is not None:
        rows, lanes = layout
        x2 = x.reshape(rows, lanes)
    else:
        # Fallback (total not a multiple of 128): keep original last dim as lanes.
        last = orig_shape[-1] if x.ndim >= 1 else 1
        x2 = x.reshape(-1, last)
        rows, lanes = x2.shape

    tile_r = _pick_tile_rows(rows, lanes, itemsize)
    grid_r = pl.cdiv(rows, tile_r)

    out2 = pl.pallas_call(
        _identity_kernel,
        out_shape=jax.ShapeDtypeStruct((rows, lanes), dtype),
        grid_spec=pltpu.PrefetchScalarGridSpec(
            num_scalar_prefetch=0,
            grid=(grid_r,),
            in_specs=[pl.BlockSpec((tile_r, lanes), lambda i: (i, 0))],
            out_specs=pl.BlockSpec((tile_r, lanes), lambda i: (i, 0)),
        ),
        compiler_params=pltpu.CompilerParams(
            dimension_semantics=("parallel",),
        ),
        # Output aliases the input HBM buffer — no extra materialization.
        input_output_aliases={0: 0},
        # Pure-bandwidth op: tell XLA there is nothing to compute here.
        cost_estimate=pl.CostEstimate(
            flops=0,
            transcendentals=0,
            bytes_accessed=2 * total * itemsize,
        ),
    )(x2)

    return out2.reshape(orig_shape)


def identity(x: jnp.ndarray) -> jnp.ndarray:
    """Identity.forward(x) -> x. Tiny inputs take a true no-op fast path."""
    if int(x.size) * jnp.dtype(x.dtype).itemsize < _SMALL_INPUT_BYTES:
        return x  # zero HBM traffic — the optimal identity
    return identity_pallas(x)


if __name__ == "__main__":
    k0, k1 = jax.random.split(jax.random.PRNGKey(0))

    # Primary test: small NCHW feature map, explicitly through the Pallas kernel.
    x = jax.random.normal(k0, (2, 4, 16, 16), dtype=jnp.float32)
    x_host = jax.device_get(x)

    y = jax.block_until_ready(identity_pallas(x))
    assert y.shape == x_host.shape, (y.shape, x_host.shape)
    assert y.dtype == x_host.dtype, (y.dtype, x_host.dtype)
    assert bool((jax.device_get(y) == x_host).all()), "pallas identity mismatch"

    # Top-level identity(): tiny inputs return x directly (true no-op).
    y_fast = jax.block_until_ready(identity(x))
    assert bool((jax.device_get(y_fast) == x_host).all()), "fast-path mismatch"

    # Multi-block lane-dense path (still small: 512 KiB, 2 grid steps).
    x2 = jax.random.normal(k1, (8, 16, 32, 32), dtype=jnp.float32)
    x2_host = jax.device_get(x2)
    y2 = jax.block_until_ready(identity_pallas(x2))
    assert y2.shape == x2_host.shape and y2.dtype == x2_host.dtype
    assert bool((jax.device_get(y2) == x2_host).all()), "multi-block identity mismatch"

    print("KERNEL_OK")
</pallas_src>

<mosaic_0001>
module attributes {stable_mosaic.version = 11 : i64} {
  func.func @_identity_kernel(%arg0: i32, %arg1: memref<1x2048xf32, #tpu.memory_space<vmem>>, %arg2: memref<1x2048xf32, #tpu.memory_space<vmem>>) attributes {dimension_semantics = [#tpu.dimension_semantics<parallel>], iteration_bounds = array<i64: 1>, scalar_prefetch = 0 : i64, scratch_operands = 0 : i64, tpu.core_type = #tpu.core_type<tc>, window_params = [{transform_indices = @transform_0, window_bounds = array<i64: 1, 2048>}, {transform_indices = @transform_1, window_bounds = array<i64: 1, 2048>}]} {
    %c0 = arith.constant 0 : index
    %c0_0 = arith.constant 0 : index
    %0 = vector.load %arg1[%c0, %c0_0] : memref<1x2048xf32, #tpu.memory_space<vmem>>, vector<1x2048xf32>
    %c0_1 = arith.constant 0 : index
    %c0_2 = arith.constant 0 : index
    %1 = vector.load %arg2[%c0_1, %c0_2] : memref<1x2048xf32, #tpu.memory_space<vmem>>, vector<1x2048xf32>
    tpu.vector_store %arg2[%c0_1, %c0_2], %0 {strides = array<i32>} : memref<1x2048xf32, #tpu.memory_space<vmem>>, vector<1x2048xf32>,
    return
  }
  func.func @transform_0(%arg0: i32) -> (i32, i32) {
    %c0_i32 = arith.constant 0 : i32
    %c0_i32_0 = arith.constant 0 : i32
    return %arg0, %c0_i32 : i32, i32
  }
  func.func @transform_1(%arg0: i32) -> (i32, i32) {
    %c0_i32 = arith.constant 0 : i32
    %c0_i32_0 = arith.constant 0 : i32
    return %arg0, %c0_i32 : i32, i32
  }
}

</mosaic_0001>

<llo_original>
// kernel: tpu_custom_call.1
$region0: #{tpu_custom_call.1}
  #allocation0 [shape = 'u32[]', space=smem, size = 0x4, offset = 0x4, fixed_abs, tag = 'smem constant byte address 0x4 - core index']
  #allocation1 [shape = 'u32[144,128]{1,0:T(1,128)}', space=vmem, size = 0x12000, scoped, tag = 'internal scratch']
  %s0 = inlined_call_operand.hbm [shape: f32[1,2048], index: 0, kind: input, shape index: {}, may-alias: {0,1}]
  %s1 = inlined_call_operand.hbm [shape: f32[1,2048], index: 1, kind: output, shape index: {}, may-alias: {0,1}]
  %s2 = sld [smem:[#allocation0]]
  $region18: #{tpu_custom_call.1} parent=0
    _
  %s4 = ssub.s32 1, %s2
  %s5 = scalar_select 0, %s4, %s2
  $region1: #{tpu_custom_call.1} parent=0
    #allocation2 [shape = 'u8[8192]{0}', space=vmem, size = 0x2000, scoped, tag = 'input window, operand 0, single buffered']
    #allocation3 [shape = 's32[1]{0}', space=sflag, size = 0x4, scoped, tag = 'scoped memory for tpu_custom_call.1']
    #allocation4 [shape = 's32[1]{0}', space=sflag, size = 0x4, scoped, tag = 'scoped memory for tpu_custom_call.1']
    #allocation5 [shape = 'u8[8192]{0}', space=vmem, size = 0x2000, scoped, tag = 'output window, operand 0, single buffered']
    %6 = vsyncpa [#allocation3], 0
    %7 = vsyncpa [#allocation4], 0
    // Predicated region
    $region2: #{tpu_custom_call.1} parent=1 // pred_check
      _
    $region3: #{tpu_custom_call.1} parent=1 // pred_check_branch
      %9 = sbr.rel (0) target = $region5
    $region4: #{tpu_custom_call.1} parent=1 // pred_region
      %s11 = ssub.s32 256, 256
      %12 = vsyncadd [#allocation3], %s11
      %s14 = sshll.u32 [#allocation2], 4
      %s15 = int_to_ptr.vmem [resolvable:$true] %s14
      %17 = dma.hbm_to_vmem [thread:$0]  %s0, 256, %s15, [#allocation3]
    $region5: #{tpu_custom_call.1} parent=1 // pred_fallthru
      _
    // Predicated region
    $region6: #{tpu_custom_call.1} parent=1 // pred_check
      _
    $region7: #{tpu_custom_call.1} parent=1 // pred_check_branch
      %19 = sbr.rel (0) target = $region9
    $region8: #{tpu_custom_call.1} parent=1 // pred_region
      %20 = dma.done [#allocation3], 256
    $region9: #{tpu_custom_call.1} parent=1 // pred_fallthru
      _
    %v21 = vld [vmem:[#allocation2] sm:$0xff]
    %v22 = vld [vmem:[#allocation2 + $0x8] sm:$0xff]
    %23 = vst [vmem:[#allocation5] sm:$0xff] %v21
    %24 = vst [vmem:[#allocation5 + $0x8] sm:$0xff] %v22
    // Predicated region
    $region10: #{tpu_custom_call.1} parent=1 // pred_check
      _
    $region11: #{tpu_custom_call.1} parent=1 // pred_check_branch
      %26 = sbr.rel (0) target = $region13
    $region12: #{tpu_custom_call.1} parent=1 // pred_region
      %s28 = ssub.s32 256, 256
      %29 = vsyncadd [#allocation4], %s28
      %s31 = sshll.u32 [#allocation5], 4
      %s32 = int_to_ptr.vmem [resolvable:$true] %s31
      %34 = dma.vmem_to_hbm [thread:$0]  %s32, 256, %s1, [#allocation4]
    $region13: #{tpu_custom_call.1} parent=1 // pred_fallthru
      _
    // Predicated region
    $region14: #{tpu_custom_call.1} parent=1 // pred_check
      _
    $region15: #{tpu_custom_call.1} parent=1 // pred_check_branch
      %36 = sbr.rel (0) target = $region17
    $region16: #{tpu_custom_call.1} parent=1 // pred_region
      %37 = dma.done [#allocation4], 256
    $region17: #{tpu_custom_call.1} parent=1 // pred_fallthru
      _
    %38 = vsyncpa [#allocation3], 1
    %39 = vsyncpa [#allocation4], 1

</llo_original>
